<compile_context>
chip_gen: v7x
topology: tpu7x:2x2x1
jax: 0.10.0
libtpu: 0.0.40
codegen_flags: <defaults>
</compile_context>

<pallas_src>
import functools

import jax
import jax.numpy as jnp
from jax.experimental import pallas as pl
from jax.experimental.pallas import tpu as pltpu


def _round_up(n, m):
    return ((n + m - 1) // m) * m


def _derive_tiling(L_out, stride, cin_pad, cout_g, in_itemsize, out_itemsize):
    """Generation-aware VMEM limit and output-length tile (multiple of 128)."""
    try:
        cap = int(pltpu.get_tpu_info().vmem_capacity_bytes)
    except Exception:  # conservative default if the query is unavailable
        cap = 64 * 1024 * 1024
    vmem_limit = min(max(cap // 2, 32 * 1024 * 1024), 96 * 1024 * 1024)
    budget = (2 * vmem_limit) // 3
    # double-buffered input window + output tile, per output lane
    per_lane = 2 * (stride * cin_pad * in_itemsize + cout_g * out_itemsize)
    tile_l = (budget // max(per_lane, 1)) // 128 * 128
    tile_l = max(128, min(tile_l, 2048))
    tile_l = min(tile_l, _round_up(L_out, 128))
    return tile_l, vmem_limit


def _conv1d_kernel(win_ref, w_ref, b_ref, o_ref, *, K, stride, cin_pad, tile_l):
    # win_ref: (1, 1, 1, stride*cin_pad, W_sub) phase-major windowed input
    # w_ref:   (1, K, Cout_g, cin_pad)          per-group, per-tap weights
    # b_ref:   (1, Cout_g, 1)                   per-group bias (f32)
    # o_ref:   (1, Cout_g, tile_l)              NCW output tile (lane-dense)
    acc = jnp.zeros(o_ref.shape[1:], jnp.float32)
    for k in range(K):                       # K is tiny & static -> unrolled
        s, q = k % stride, k // stride       # phase / shift of this tap
        xk = win_ref[0, 0, 0, s * cin_pad:(s + 1) * cin_pad, q:q + tile_l]
        acc = acc + jnp.dot(w_ref[0, k], xk, preferred_element_type=jnp.float32)
    o_ref[0] = (acc + b_ref[0]).astype(o_ref.dtype)


def conv1d_pad_pallas(x, weight, bias, *, stride, groups=1,
                      compute_dtype=jnp.bfloat16):
    """Semantics of Conv1dPad.forward: 'same'-style auto padding + Conv1d.

    x:      (B, C_in, L) float32
    weight: (C_out, C_in // groups, K)
    bias:   (C_out,)
    returns (B, C_out, L_out) with L_out = ceil(L / stride)
    """
    B, C_in, L = x.shape
    C_out, Cin_g, K = weight.shape
    S = int(stride)
    assert C_in == Cin_g * groups and C_out % groups == 0
    Cout_g = C_out // groups

    # Auto "same" padding exactly as in the PyTorch module.
    L_out = (L + S - 1) // S
    p = max(0, (L_out - 1) * S + K - L)
    pad_left = p // 2

    cin_pad = _round_up(Cin_g, 8)
    in_itemsize = jnp.dtype(compute_dtype).itemsize
    out_itemsize = jnp.dtype(x.dtype).itemsize
    TILE_L, vmem_limit = _derive_tiling(L_out, S, cin_pad, Cout_g,
                                        in_itemsize, out_itemsize)

    Lp = _round_up(L_out, TILE_L)
    n_lt = Lp // TILE_L
    shift_max = (K - 1) // S             # max intra-phase shift needed
    M = Lp + shift_max                   # per-phase length required
    W_sub = TILE_L + shift_max           # per-tile window length (per phase)
    L_tot = M * S                        # padded input length

    # ---- glue (plain JAX, ~1x input sized): pad -> phases -> tile windows ---
    x_g = x.reshape(B, groups, Cin_g, L)
    x_g = jnp.pad(x_g, ((0, 0), (0, 0), (0, cin_pad - Cin_g),
                        (pad_left, L_tot - L - pad_left)))
    x_g = x_g.astype(compute_dtype)

    # phases[b, g, s, c, m] = x_pad[b, g, c, m*S + s]
    ph = x_g.reshape(B, groups, cin_pad, M, S)
    ph = jnp.transpose(ph, (0, 1, 4, 2, 3))            # (B, G, S, cin_pad, M)

    # windows[b, g, lt, s*cin_pad + c, :] = phases[..., lt*TILE_L : +W_sub]
    win = jnp.stack([ph[..., lt * TILE_L: lt * TILE_L + W_sub]
                     for lt in range(n_lt)], axis=2)   # (B,G,n_lt,S,cin_pad,W)
    win = win.reshape(B, groups, n_lt, S * cin_pad, W_sub)

    # weights: (groups, K, Cout_g, cin_pad) ; bias: (groups, Cout_g, 1) f32
    w_mat = weight.reshape(groups, Cout_g, Cin_g, K)
    w_mat = jnp.transpose(w_mat, (0, 3, 1, 2))
    w_mat = jnp.pad(w_mat, ((0, 0), (0, 0), (0, 0), (0, cin_pad - Cin_g)))
    w_mat = w_mat.astype(compute_dtype)
    b_mat = bias.reshape(groups, Cout_g, 1).astype(jnp.float32)

    grid = (B, groups, n_lt)             # leading parallel axis has extent B
    kernel = functools.partial(_conv1d_kernel, K=K, stride=S,
                               cin_pad=cin_pad, tile_l=TILE_L)

    flops = 2 * B * C_out * Cin_g * K * L_out
    bytes_accessed = (win.size * in_itemsize + w_mat.size * in_itemsize
                      + b_mat.size * 4 + B * C_out * Lp * out_itemsize)

    out = pl.pallas_call(
        kernel,
        out_shape=jax.ShapeDtypeStruct((B, C_out, Lp), x.dtype),
        grid=grid,
        in_specs=[
            pl.BlockSpec((1, 1, 1, S * cin_pad, W_sub),
                         lambda b, g, lt: (b, g, lt, 0, 0)),
            pl.BlockSpec((1, K, Cout_g, cin_pad),
                         lambda b, g, lt: (g, 0, 0, 0)),
            pl.BlockSpec((1, Cout_g, 1),
                         lambda b, g, lt: (g, 0, 0)),
        ],
        out_specs=pl.BlockSpec((1, Cout_g, TILE_L),
                               lambda b, g, lt: (b, g, lt)),
        compiler_params=pltpu.CompilerParams(
            dimension_semantics=("parallel", "parallel", "parallel"),
            vmem_limit_bytes=vmem_limit,
        ),
        cost_estimate=pl.CostEstimate(
            flops=flops, transcendentals=0, bytes_accessed=bytes_accessed),
    )(win, w_mat, b_mat)

    if Lp != L_out:
        out = out[:, :, :L_out]
    return out


def _reference_conv1d_pad(x, weight, bias, *, stride, groups=1):
    """Pure-JAX reference (mirrors torch.nn.functional pad + conv1d)."""
    B, C_in, L = x.shape
    C_out, _, K = weight.shape
    out_dim = (L + stride - 1) // stride
    p = max(0, (out_dim - 1) * stride + K - L)
    pad_left = p // 2
    pad_right = p - pad_left
    y = jax.lax.conv_general_dilated(
        x, weight,
        window_strides=(stride,),
        padding=[(pad_left, pad_right)],
        dimension_numbers=("NCH", "OIH", "NCH"),
        feature_group_count=groups,
    )
    return y + bias[None, :, None]


if __name__ == "__main__":
    def run_case(idx, *, B, C_in, C_out, K, stride, groups, L,
                 compute_dtype, atol):
        kx, kw, kb = jax.random.split(
            jax.random.fold_in(jax.random.PRNGKey(0), idx), 3)
        x = jax.random.normal(kx, (B, C_in, L), dtype=jnp.float32)
        w = jax.random.normal(
            kw, (C_out, C_in // groups, K), dtype=jnp.float32) * 0.1
        b = jax.random.normal(kb, (C_out,), dtype=jnp.float32) * 0.1

        out = conv1d_pad_pallas(x, w, b, stride=stride, groups=groups,
                                compute_dtype=compute_dtype)
        out = jax.block_until_ready(out)

        ref = _reference_conv1d_pad(x, w, b, stride=stride, groups=groups)
        assert out.shape == ref.shape, (out.shape, ref.shape)
        err = float(jnp.max(jnp.abs(out - ref)))
        assert jnp.allclose(out, ref, atol=atol, rtol=atol), (
            f"case {idx}: mismatch vs reference, max abs err {err}")

    # Module config (synthetic, deterministic init — no checkpoint load).
    run_case(0, B=2, C_in=4, C_out=8, K=3, stride=2, groups=1, L=16,
             compute_dtype=jnp.bfloat16, atol=3e-2)   # bf16 MXU path
    run_case(1, B=2, C_in=4, C_out=8, K=3, stride=2, groups=1, L=16,
             compute_dtype=jnp.float32, atol=1e-4)    # f32 parity path
    run_case(2, B=2, C_in=4, C_out=16, K=3, stride=1, groups=2, L=20,
             compute_dtype=jnp.bfloat16, atol=3e-2)   # grouped, stride 1

    print("KERNEL_OK")
</pallas_src>

<mosaic_0001>
module attributes {stable_mosaic.version = 11 : i64} {
  func.func @_conv1d_kernel(%arg0: i32, %arg1: i32, %arg2: i32, %arg3: memref<1x1x1x16x129xbf16, #tpu.memory_space<vmem>>, %arg4: memref<1x3x8x8xbf16, #tpu.memory_space<vmem>>, %arg5: memref<1x8x1xf32, #tpu.memory_space<vmem>>, %arg6: memref<1x8x128xf32, #tpu.memory_space<vmem>>) attributes {dimension_semantics = [#tpu.dimension_semantics<parallel>, #tpu.dimension_semantics<parallel>, #tpu.dimension_semantics<parallel>], iteration_bounds = array<i64: 2, 1, 1>, scalar_prefetch = 0 : i64, scratch_operands = 0 : i64, tpu.core_type = #tpu.core_type<tc>, window_params = [{transform_indices = @transform_0, window_bounds = array<i64: 1, 1, 1, 16, 129>}, {transform_indices = @transform_1, window_bounds = array<i64: 1, 3, 8, 8>}, {transform_indices = @transform_2, window_bounds = array<i64: 1, 8, 1>}, {transform_indices = @transform_3, window_bounds = array<i64: 1, 8, 128>}]} {
    %cst = arith.constant 0.000000e+00 : f32
    %0 = vector.broadcast %cst : f32 to vector<8x128xf32>
    %c0 = arith.constant 0 : index
    %c0_0 = arith.constant 0 : index
    %c0_1 = arith.constant 0 : index
    %c0_2 = arith.constant 0 : index
    %c0_3 = arith.constant 0 : index
    %1 = vector.load %arg3[%c0, %c0_0, %c0_1, %c0_2, %c0_3] : memref<1x1x1x16x129xbf16, #tpu.memory_space<vmem>>, vector<1x1x1x8x128xbf16>
    %2 = vector.shape_cast %1 : vector<1x1x1x8x128xbf16> to vector<8x128xbf16>
    %c0_4 = arith.constant 0 : index
    %c0_5 = arith.constant 0 : index
    %c0_6 = arith.constant 0 : index
    %c0_7 = arith.constant 0 : index
    %3 = vector.load %arg4[%c0_4, %c0_5, %c0_6, %c0_7] : memref<1x3x8x8xbf16, #tpu.memory_space<vmem>>, vector<1x1x8x8xbf16>
    %4 = vector.shape_cast %3 : vector<1x1x8x8xbf16> to vector<8x8xbf16>
    %cst_8 = arith.constant dense<0.000000e+00> : vector<8x128xf32>
    %5 = tpu.matmul %4, %2, %cst_8 {dimension_numbers = #tpu.dot_dimension_numbers<[1], [0], [0], [1], [0, 0, 1, 1], [], []>} : vector<8x8xbf16>, vector<8x128xbf16>, vector<8x128xf32> -> vector<8x128xf32>
    %6 = arith.addf %0, %5 : vector<8x128xf32>
    %c0_9 = arith.constant 0 : index
    %c0_10 = arith.constant 0 : index
    %c0_11 = arith.constant 0 : index
    %c8 = arith.constant 8 : index
    %c0_12 = arith.constant 0 : index
    %7 = vector.load %arg3[%c0_9, %c0_10, %c0_11, %c8, %c0_12] : memref<1x1x1x16x129xbf16, #tpu.memory_space<vmem>>, vector<1x1x1x8x128xbf16>
    %8 = vector.shape_cast %7 : vector<1x1x1x8x128xbf16> to vector<8x128xbf16>
    %c0_13 = arith.constant 0 : index
    %c1 = arith.constant 1 : index
    %c0_14 = arith.constant 0 : index
    %c0_15 = arith.constant 0 : index
    %9 = vector.load %arg4[%c0_13, %c1, %c0_14, %c0_15] : memref<1x3x8x8xbf16, #tpu.memory_space<vmem>>, vector<1x1x8x8xbf16>
    %10 = vector.shape_cast %9 : vector<1x1x8x8xbf16> to vector<8x8xbf16>
    %cst_16 = arith.constant dense<0.000000e+00> : vector<8x128xf32>
    %11 = tpu.matmul %10, %8, %cst_16 {dimension_numbers = #tpu.dot_dimension_numbers<[1], [0], [0], [1], [0, 0, 1, 1], [], []>} : vector<8x8xbf16>, vector<8x128xbf16>, vector<8x128xf32> -> vector<8x128xf32>
    %12 = arith.addf %6, %11 : vector<8x128xf32>
    %c0_17 = arith.constant 0 : index
    %c0_18 = arith.constant 0 : index
    %c0_19 = arith.constant 0 : index
    %c0_20 = arith.constant 0 : index
    %c1_21 = arith.constant 1 : index
    %13 = vector.load %arg3[%c0_17, %c0_18, %c0_19, %c0_20, %c1_21] : memref<1x1x1x16x129xbf16, #tpu.memory_space<vmem>>, vector<1x1x1x8x128xbf16>
    %14 = vector.shape_cast %13 : vector<1x1x1x8x128xbf16> to vector<8x128xbf16>
    %c0_22 = arith.constant 0 : index
    %c2 = arith.constant 2 : index
    %c0_23 = arith.constant 0 : index
    %c0_24 = arith.constant 0 : index
    %15 = vector.load %arg4[%c0_22, %c2, %c0_23, %c0_24] : memref<1x3x8x8xbf16, #tpu.memory_space<vmem>>, vector<1x1x8x8xbf16>
    %16 = vector.shape_cast %15 : vector<1x1x8x8xbf16> to vector<8x8xbf16>
    %cst_25 = arith.constant dense<0.000000e+00> : vector<8x128xf32>
    %17 = tpu.matmul %16, %14, %cst_25 {dimension_numbers = #tpu.dot_dimension_numbers<[1], [0], [0], [1], [0, 0, 1, 1], [], []>} : vector<8x8xbf16>, vector<8x128xbf16>, vector<8x128xf32> -> vector<8x128xf32>
    %18 = arith.addf %12, %17 : vector<8x128xf32>
    %c0_26 = arith.constant 0 : index
    %c0_27 = arith.constant 0 : index
    %c0_28 = arith.constant 0 : index
    %19 = vector.load %arg5[%c0_26, %c0_27, %c0_28] : memref<1x8x1xf32, #tpu.memory_space<vmem>>, vector<1x8x1xf32>
    %20 = vector.shape_cast %19 : vector<1x8x1xf32> to vector<8x1xf32>
    %21 = vector.broadcast %20 : vector<8x1xf32> to vector<8x128xf32>
    %22 = arith.addf %18, %21 : vector<8x128xf32>
    %c0_29 = arith.constant 0 : index
    %c0_30 = arith.constant 0 : index
    %c0_31 = arith.constant 0 : index
    %23 = vector.load %arg6[%c0_29, %c0_30, %c0_31] : memref<1x8x128xf32, #tpu.memory_space<vmem>>, vector<1x8x128xf32>
    %24 = vector.shape_cast %23 : vector<1x8x128xf32> to vector<8x128xf32>
    %25 = vector.shape_cast %22 : vector<8x128xf32> to vector<1x8x128xf32>
    tpu.vector_store %arg6[%c0_29, %c0_30, %c0_31], %25 {strides = array<i32>} : memref<1x8x128xf32, #tpu.memory_space<vmem>>, vector<1x8x128xf32>,
    return
  }
  func.func @transform_0(%arg0: i32, %arg1: i32, %arg2: i32) -> (i32, i32, i32, i32, i32) {
    %c0_i32 = arith.constant 0 : i32
    %c0_i32_0 = arith.constant 0 : i32
    %c0_i32_1 = arith.constant 0 : i32
    return %arg0, %arg1, %arg2, %c0_i32, %c0_i32_0 : i32, i32, i32, i32, i32
  }
  func.func @transform_1(%arg0: i32, %arg1: i32, %arg2: i32) -> (i32, i32, i32, i32) {
    %c0_i32 = arith.constant 0 : i32
    %c0_i32_0 = arith.constant 0 : i32
    %c0_i32_1 = arith.constant 0 : i32
    %c0_i32_2 = arith.constant 0 : i32
    return %arg1, %c0_i32, %c0_i32_0, %c0_i32_1 : i32, i32, i32, i32
  }
  func.func @transform_2(%arg0: i32, %arg1: i32, %arg2: i32) -> (i32, i32, i32) {
    %c0_i32 = arith.constant 0 : i32
    %c0_i32_0 = arith.constant 0 : i32
    %c0_i32_1 = arith.constant 0 : i32
    return %arg1, %c0_i32, %c0_i32_0 : i32, i32, i32
  }
  func.func @transform_3(%arg0: i32, %arg1: i32, %arg2: i32) -> (i32, i32, i32) {
    %c0_i32 = arith.constant 0 : i32
    return %arg0, %arg1, %arg2 : i32, i32, i32
  }
}

</mosaic_0001>

<llo_original>
// kernel: tpu_custom_call.1
$region0: #{tpu_custom_call.1}
  #allocation0 [shape = 'u32[]', space=smem, size = 0x4, offset = 0x4, fixed_abs, tag = 'smem constant byte address 0x4 - core index']
  #allocation1 [shape = 'u32[144,128]{1,0:T(1,128)}', space=vmem, size = 0x12000, scoped, tag = 'internal scratch']
  %s0 = inlined_call_operand.hbm [shape: bf16[2,1,1,16,129], index: 0, kind: input, shape index: {}]
  %s1 = inlined_call_operand.vmem [shape: bf16[1,3,8,8], index: 1, kind: input, shape index: {}]
  %s2 = inlined_call_operand.vmem [shape: f32[1,8,1], index: 2, kind: input, shape index: {}]
  %s3 = inlined_call_operand.hbm [shape: f32[2,8,128], index: 3, kind: output, shape index: {}]
  %s4 = sld [smem:[#allocation0]]
  $region49: #{tpu_custom_call.1} parent=0
    _
  %s6 = ssub.s32 1, %s4
  %s7 = scalar_select 0, %s6, %s4
  $region1: #{tpu_custom_call.1} parent=0
    #allocation2 [shape = 'u8[16384]{0}', space=vmem, size = 0x4000, scoped, tag = 'input window, operand 0']
    #allocation3 [shape = 's32[2]{0}', space=sflag, size = 0x8, scoped, tag = 'scoped memory for tpu_custom_call.1']
    #allocation4 [shape = 's32[2]{0}', space=sflag, size = 0x8, scoped, tag = 'scoped memory for tpu_custom_call.1']
    #allocation5 [shape = 'u8[8192]{0}', space=vmem, size = 0x2000, scoped, tag = 'output window, operand 0']
    %8 = vsyncpa [#allocation3], 0
    %s9 = scalar_lea.sflag [#allocation3], 1
    %10 = vsyncpa %s9, 0
    %11 = vsyncpa [#allocation4], 0
    %s12 = scalar_lea.sflag [#allocation4], 1
    %13 = vsyncpa %s12, 0
    loop: start=0, step=1, limit=4
    $region2: #{tpu_custom_call.1} parent=1 // loop_pre_header
      _
    $region3: #{tpu_custom_call.1} parent=1 // loop_header
      %s15 = sphi 0, %s19
      %p16 = scmp.ge.s32.totalorder %s15, 4
      %s22 = sphi 0, %s41
      %s23 = sphi 0, %s37
      %s24 = sphi 0, %s33
      %s25 = sphi 0, %s22
      %s26 = sphi 0, %s23
      %s27 = sphi 0, %s24
      %s28 = sphi 0, %s25
      %s29 = sphi 0, %s26
      %s30 = sphi 0, %s27
      %s48 = sphi 0, %s50
      %s51 = sphi 0, %s48
      %s52 = sphi 0, %s51
      %s68 = sphi 0, %s52
      %s74 = sphi 0, %s76
      %s77 = sphi 0, %s74
      %s78 = sphi 0, %s77
      %s94 = sphi 0, %s78
      %s100 = sphi 0, %s102
      %s103 = sphi 0, %s100
      %s104 = sphi 0, %s103
      %s120 = sphi 0, %s104
      %s130 = sphi 0, %s132
      %s133 = sphi 0, %s130
      %s134 = sphi 0, %s133
      %s150 = sphi 0, %s134
    $region4: #{tpu_custom_call.1} parent=1 // loop_header_branch
      %18 = sbr.rel (%p16) target = $region8
    $region5: #{tpu_custom_call.1} parent=1 // loop_body
      %s20 = ssub.s32 %s15, 1
      %s21 = ssub.s32 %s15, 2
      %s31 = sadd.s32 1, %s24
      %p32 = scmp.ge.s32.totalorder %s31, 1
      %s33 = scalar_select %p32, 0, %s31
      %s34 = sadd.s32 1, %s23
      %s35 = scalar_select %p32, %s34, %s23
      %p36 = scmp.ge.s32.totalorder %s35, 1
      %s37 = scalar_select %p36, 0, %s35
      %s38 = sadd.s32 1, %s22
      %s39 = scalar_select %p36, %s38, %s22
      %p40 = scmp.ge.s32.totalorder %s39, 2
      %s41 = scalar_select %p40, 0, %s39
      %s42 = ssub.s32 %s22, %s41
      %s43 = ssub.s32 %s23, %s37
      %s44 = sor.u32 %s42, %s43
      %s45 = ssub.s32 %s24, %s33
      %s46 = sor.u32 %s44, %s45
      %p47 = scmp.eq.s32.totalorder %s46, 0
      %s49 = sadd.s32 %s48, 1
      %s50 = scalar_select %p47, %s48, %s49
      %p53 = pneg %p47
      %p54 = scmp.eq.s32.totalorder %s15, 1
      %p55 = por %p53, %p54
      %p56 = scmp.ne.s32.totalorder %s48, %s51
      %p57 = scmp.eq.s32.totalorder %s15, 0
      %p58 = por %p56, %p57
      %p59 = scmp.ne.s32.totalorder %s48, %s51
      %p60 = scmp.eq.s32.totalorder %s20, 1
      %p61 = por %p59, %p60
      %p62 = scmp.ne.s32.totalorder %s51, %s52
      %p63 = scmp.eq.s32.totalorder %s20, 0
      %p64 = por %p62, %p63
      %p65 = scmp.ne.s32.totalorder %s51, %s52
      %p66 = scmp.eq.s32.totalorder %s21, 1
      %p67 = por %p65, %p66
      %p69 = scmp.ne.s32.totalorder %s52, %s68
      %p70 = scmp.eq.s32.totalorder %s21, 0
      %p71 = por %p69, %p70
      %s72 = ssub.s32 %s23, %s37
      %p73 = scmp.eq.s32.totalorder %s72, 0
      %s75 = sadd.s32 %s74, 1
      %s76 = scalar_select %p73, %s74, %s75
      %p79 = pneg %p73
      %p80 = scmp.eq.s32.totalorder %s15, 1
      %p81 = por %p79, %p80
      %p82 = scmp.ne.s32.totalorder %s74, %s77
      %p83 = scmp.eq.s32.totalorder %s15, 0
      %p84 = por %p82, %p83
      %p85 = scmp.ne.s32.totalorder %s74, %s77
      %p86 = scmp.eq.s32.totalorder %s20, 1
      %p87 = por %p85, %p86
      %p88 = scmp.ne.s32.totalorder %s77, %s78
      %p89 = scmp.eq.s32.totalorder %s20, 0
      %p90 = por %p88, %p89
      %p91 = scmp.ne.s32.totalorder %s77, %s78
      %p92 = scmp.eq.s32.totalorder %s21, 1
      %p93 = por %p91, %p92
      %p95 = scmp.ne.s32.totalorder %s78, %s94
      %p96 = scmp.eq.s32.totalorder %s21, 0
      %p97 = por %p95, %p96
      %s98 = ssub.s32 %s23, %s37
      %p99 = scmp.eq.s32.totalorder %s98, 0
      %s101 = sadd.s32 %s100, 1
      %s102 = scalar_select %p99, %s100, %s101
      %p105 = pneg %p99
      %p106 = scmp.eq.s32.totalorder %s15, 1
      %p107 = por %p105, %p106
      %p108 = scmp.ne.s32.totalorder %s100, %s103
      %p109 = scmp.eq.s32.totalorder %s15, 0
      %p110 = por %p108, %p109
      %p111 = scmp.ne.s32.totalorder %s100, %s103
      %p112 = scmp.eq.s32.totalorder %s20, 1
      %p113 = por %p111, %p112
      %p114 = scmp.ne.s32.totalorder %s103, %s104
      %p115 = scmp.eq.s32.totalorder %s20, 0
      %p116 = por %p114, %p115
      %p117 = scmp.ne.s32.totalorder %s103, %s104
      %p118 = scmp.eq.s32.totalorder %s21, 1
      %p119 = por %p117, %p118
      %p121 = scmp.ne.s32.totalorder %s104, %s120
      %p122 = scmp.eq.s32.totalorder %s21, 0
      %p123 = por %p121, %p122
      %s124 = ssub.s32 %s22, %s41
      %s125 = ssub.s32 %s23, %s37
      %s126 = sor.u32 %s124, %s125
      %s127 = ssub.s32 %s24, %s33
      %s128 = sor.u32 %s126, %s127
      %p129 = scmp.eq.s32.totalorder %s128, 0
      %s131 = sadd.s32 %s130, 1
      %s132 = scalar_select %p129, %s130, %s131
      %p135 = pneg %p129
      %p136 = scmp.eq.s32.totalorder %s15, 1
      %p137 = por %p135, %p136
      %p138 = scmp.ne.s32.totalorder %s130, %s133
      %p139 = scmp.eq.s32.totalorder %s15, 0
      %p140 = por %p138, %p139
      %p141 = scmp.ne.s32.totalorder %s130, %s133
      %p142 = scmp.eq.s32.totalorder %s20, 1
      %p143 = por %p141, %p142
      %p144 = scmp.ne.s32.totalorder %s133, %s134
      %p145 = scmp.eq.s32.totalorder %s20, 0
      %p146 = por %p144, %p145
      %p147 = scmp.ne.s32.totalorder %s133, %s134
      %p148 = scmp.eq.s32.totalorder %s21, 1
      %p149 = por %p147, %p148
      %p151 = scmp.ne.s32.totalorder %s134, %s150
      %p152 = scmp.eq.s32.totalorder %s21, 0
      %p153 = por %p151, %p152
      %p154 = scmp.le.s32.totalorder 1, %s15
      %p155 = scmp.lt.s32.totalorder %s15, 3
      %p156 = pnand %p154, %p155
      %p157 = pneg %p156
      // Predicated region
      $region9: #{tpu_custom_call.1} parent=5 // pred_check
        _
      $region10: #{tpu_custom_call.1} parent=5 // pred_check_branch
        %159 = sbr.rel (%p156) target = $region12
      $region11: #{tpu_custom_call.1} parent=5 // pred_region
        %s160 = ssub.s32 %s15, 1
        // Predicated region
        $region13: #{tpu_custom_call.1} parent=11 // pred_check
          %p161 = pneg %p90
        $region14: #{tpu_custom_call.1} parent=11 // pred_check_branch
          %163 = sbr.rel (%p161) target = $region16
        $region15: #{tpu_custom_call.1} parent=11 // pred_region
          %p164 = scmp.lt.s32.totalorder %s26, 0
          %s165 = scalar_select %p164, %s26, 0
          %s166 = smul.addr %s165, 3
          %s167 = smul.addr %s166, 4
          %s168 = scalar_lea.vmem %s1, %s167
        $region16: #{tpu_custom_call.1} parent=11 // pred_fallthru
          _
        // Predicated region
        $region17: #{tpu_custom_call.1} parent=11 // pred_check
          %p169 = pneg %p116
        $region18: #{tpu_custom_call.1} parent=11 // pred_check_branch
          %171 = sbr.rel (%p169) target = $region20
        $region19: #{tpu_custom_call.1} parent=11 // pred_region
          %p172 = scmp.lt.s32.totalorder %s26, 0
          %s173 = scalar_select %p172, %s26, 0
          %s174 = smul.addr %s173, 8
          %s175 = scalar_lea.vmem %s2, %s174
        $region20: #{tpu_custom_call.1} parent=11 // pred_fallthru
          _
      $region12: #{tpu_custom_call.1} parent=5 // pred_fallthru
        _
      %p176 = scmp.lt.s32.totalorder %s15, 2
      // Predicated region
      $region21: #{tpu_custom_call.1} parent=5 // pred_check
        %p177 = pneg %p176
      $region22: #{tpu_custom_call.1} parent=5 // pred_check_branch
        %179 = sbr.rel (%p177) target = $region24
      $region23: #{tpu_custom_call.1} parent=5 // pred_region
        // Predicated region
        $region25: #{tpu_custom_call.1} parent=23 // pred_check
          %p180 = pneg %p58
        $region26: #{tpu_custom_call.1} parent=23 // pred_check_branch
          %182 = sbr.rel (%p180) target = $region28
        $region27: #{tpu_custom_call.1} parent=23 // pred_region
          %s183 = sand.u32 %s48, 1
          %s184 = scalar_lea.sflag [#allocation3], %s183
          %s185 = sand.u32 %s48, 1
          %s186 = smul.addr %s185, 16
          %s187 = scalar_lea.vmem [#allocation2], %s186
          %s189 = ssub.s32 256, 256
          %190 = vsyncadd %s184, %s189
          %s191 = smul.addr %s24, 4
          %s192 = smul.addr %s23, 4
          %s193 = sadd.s32 %s191, %s192
          %s194 = smul.addr %s22, 4
          %s195 = sadd.s32 %s193, %s194
          %s196 = smul.addr %s195, 64
          %s197 = scalar_lea.hbm %s0, %s196
          %s198 = sshll.u32 %s187, 4
          %s199 = int_to_ptr.vmem [resolvable:$true] %s198
          %204 = dma.hbm_to_vmem [thread:$0]  %s197, 256, %s199, %s184, 128, 128, 8
        $region28: #{tpu_custom_call.1} parent=23 // pred_fallthru
          _
      $region24: #{tpu_custom_call.1} parent=5 // pred_fallthru
        _
      %p205 = scmp.le.s32.totalorder 1, %s15
      %p206 = scmp.lt.s32.totalorder %s15, 3
      %p207 = pnand %p205, %p206
      %p208 = pneg %p207
      // Predicated region
      $region29: #{tpu_custom_call.1} parent=5 // pred_check
        _
      $region30: #{tpu_custom_call.1} parent=5 // pred_check_branch
        %210 = sbr.rel (%p207) target = $region32
      $region31: #{tpu_custom_call.1} parent=5 // pred_region
        %s211 = ssub.s32 %s15, 1
        %s212 = sand.u32 %s51, 1
        %s213 = scalar_lea.sflag [#allocation3], %s212
        %s214 = sand.u32 %s51, 1
        %s215 = smul.addr %s214, 16
        %s216 = scalar_lea.vmem [#allocation2], %s215
        // Predicated region
        $region33: #{tpu_custom_call.1} parent=31 // pred_check
          %p217 = pneg %p64
        $region34: #{tpu_custom_call.1} parent=31 // pred_check_branch
          %219 = sbr.rel (%p217) target = $region36
        $region35: #{tpu_custom_call.1} parent=31 // pred_region
          %220 = dma.done %s213, 256
        $region36: #{tpu_custom_call.1} parent=31 // pred_fallthru
          _
        %s221 = sand.u32 %s51, 1
        %s222 = scalar_lea.sflag [#allocation3], %s221
        %s223 = sand.u32 %s51, 1
        %s224 = smul.addr %s223, 16
        %s225 = scalar_lea.vmem [#allocation2], %s224
        %p226 = pneg %p64
        %p227 = pneg %p61
        %p228 = scmp.lt.s32.totalorder %s26, 0
        %s229 = scalar_select %p228, %s26, 0
        %s230 = smul.addr %s229, 3
        %s231 = smul.addr %s230, 4
        %s232 = scalar_lea.vmem %s1, %s231
        %p233 = pneg %p90
        %p234 = pneg %p87
        %p235 = scmp.lt.s32.totalorder %s26, 0
        %s236 = scalar_select %p235, %s26, 0
        %s237 = smul.addr %s236, 8
        %s238 = scalar_lea.vmem %s2, %s237
        %p239 = pneg %p116
        %p240 = pneg %p113
        %p241 = pneg %p146
        %p242 = pneg %p143
        %s243 = sand.u32 %s133, 1
        %s244 = scalar_lea.sflag [#allocation4], %s243
        %s245 = sand.u32 %s133, 1
        %s246 = smul.addr %s245, 8
        %s247 = scalar_lea.vmem [#allocation5], %s246
        %p248 = scmp.lt.s32.totalorder %s26, 0
        %s249 = scalar_select %p248, %s26, 0
        %s250 = smul.addr %s249, 3
        %s251 = smul.addr %s250, 4
        %s252 = scalar_lea.vmem %s1, %s251
        %p253 = scmp.lt.s32.totalorder %s26, 0
        %s254 = scalar_select %p253, %s26, 0
        %s255 = smul.addr %s254, 8
        %s256 = scalar_lea.vmem %s2, %s255
        %v258 = vld [vmem:[%s216] sm:$0xf]
        %v259 = vld [vmem:[%s252] sm:$0xf]
        %v260 = vld [vmem:[%s216 + $0x8] sm:$0xf]
        %s261 = scalar_lea.vmem %s252, 4
        %v262 = vld [vmem:[%s261] sm:$0xf]
        %vm263 = vcmask 64512
        %v265 = vsel %vm263, %v262, 0
        %vm267 = vcmask 1043456
        %v269 = vsel %vm267, %v260, 0
        %271 = vmatprep.subr.bf16.mxu0 0
        %272 = vmatpush1.bf16.msra.mxu0 %v269
        %273 = vmatprep.subr.bf16.mxu0 0
        %274 = vmatpush1.bf16.msra.mxu0 0
        %275 = vmatprep.subr.bf16.mxu0 0
        %276 = vmatpush1.bf16.msra.mxu0 0
        %277 = vmatprep.subr.bf16.mxu0 0
        %278 = vmatpush1.bf16.msra.mxu0 0
        %279 = vmatprep.subr.bf16.mxu0 0
        %280 = vmatpush1.bf16.msra.mxu0 0
        %281 = vmatprep.subr.bf16.mxu0 0
        %282 = vmatpush1.bf16.msra.mxu0 0
        %283 = vmatprep.subr.bf16.mxu0 0
        %284 = vmatpush1.bf16.msra.mxu0 0
        %285 = vmatprep.subr.bf16.mxu0 0
        %286 = vmatpush1.bf16.msra.mxu0 0
        %287 = vmatprep.subr.bf16.mxu0 0
        %288 = vmatpush1.bf16.msra.mxu0 0
        %289 = vmatprep.subr.bf16.mxu0 0
        %290 = vmatpush1.bf16.msra.mxu0 0
        %291 = vmatprep.subr.bf16.mxu0 0
        %292 = vmatpush1.bf16.msra.mxu0 0
        %293 = vmatprep.subr.bf16.mxu0 0
        %294 = vmatpush1.bf16.msra.mxu0 0
        %295 = vmatprep.subr.bf16.mxu0 0
        %296 = vmatpush1.bf16.msra.mxu0 0
        %297 = vmatprep.subr.bf16.mxu0 0
        %298 = vmatpush1.bf16.msra.mxu0 0
        %299 = vmatprep.subr.bf16.mxu0 0
        %300 = vmatpush1.bf16.msra.mxu0 0
        %301 = vmatprep.subr.bf16.mxu0 0
        %302 = vmatpush1.bf16.msra.mxu0 0
        %303 = vmatprep.mubr.bf16.mxu0 0
        %304 = vmatmul.mubr.bf16.gmra.mrb[0].mxu0 %v265
        %v305 = vpop.f32.mrb[0].mxu0
        %v306 = vadd.f32 0.0, %v305
        %v307 = vpop.f32.mrb[0].mxu0
        %v308 = vpop.f32.mrb[0].mxu0
        %v309 = vpop.f32.mrb[0].mxu0
        %310 = vdwg.mxu0
        %v312 = vsel %vm263, %v259, 0
        %v315 = vsel %vm267, %v258, 0
        %317 = vmatprep.subr.bf16.mxu0 0
        %318 = vmatpush1.bf16.msra.mxu0 %v315
        %319 = vmatprep.subr.bf16.mxu0 0
        %320 = vmatpush1.bf16.msra.mxu0 0
        %321 = vmatprep.subr.bf16.mxu0 0
        %322 = vmatpush1.bf16.msra.mxu0 0
        %323 = vmatprep.subr.bf16.mxu0 0
        %324 = vmatpush1.bf16.msra.mxu0 0
        %325 = vmatprep.subr.bf16.mxu0 0
        %326 = vmatpush1.bf16.msra.mxu0 0
        %327 = vmatprep.subr.bf16.mxu0 0
        %328 = vmatpush1.bf16.msra.mxu0 0
        %329 = vmatprep.subr.bf16.mxu0 0
        %330 = vmatpush1.bf16.msra.mxu0 0
        %331 = vmatprep.subr.bf16.mxu0 0
        %332 = vmatpush1.bf16.msra.mxu0 0
        %333 = vmatprep.subr.bf16.mxu0 0
        %334 = vmatpush1.bf16.msra.mxu0 0
        %335 = vmatprep.subr.bf16.mxu0 0
        %336 = vmatpush1.bf16.msra.mxu0 0
        %337 = vmatprep.subr.bf16.mxu0 0
        %338 = vmatpush1.bf16.msra.mxu0 0
        %339 = vmatprep.subr.bf16.mxu0 0
        %340 = vmatpush1.bf16.msra.mxu0 0
        %341 = vmatprep.subr.bf16.mxu0 0
        %342 = vmatpush1.bf16.msra.mxu0 0
        %343 = vmatprep.subr.bf16.mxu0 0
        %344 = vmatpush1.bf16.msra.mxu0 0
        %345 = vmatprep.subr.bf16.mxu0 0
        %346 = vmatpush1.bf16.msra.mxu0 0
        %347 = vmatprep.subr.bf16.mxu0 0
        %348 = vmatpush1.bf16.msra.mxu0 0
        %349 = vmatprep.mubr.bf16.mxu0 0
        %350 = vmatmul.mubr.bf16.gmra.mrb[0].mxu0 %v312
        %v351 = vpop.f32.mrb[0].mxu0
        %v352 = vadd.f32 %v306, %v351
        %v353 = vpop.f32.mrb[0].mxu0
        %v354 = vpop.f32.mrb[0].mxu0
        %v355 = vpop.f32.mrb[0].mxu0
        %356 = vdwg.mxu0
        %v357 = vld [vmem:[%s216] sm:$0xff]
        %s358 = scalar_lea.vmem %s252, 8
        %v359 = vld [vmem:[%s358] sm:$0xf]
        %v361 = vunpack.c.l.b16 %v357
        %v362 = vunpack.c.h.b16 %v357
        %v363 = vpack.c.b16 %v361, %v361
        %v364 = vpack.c.b16 %v362, %v362
        %365 = vrot.lane.b32.xlu0 %v363, 127
        %v366 = vpop.permute.xlu0 %365
        %367 = vrot.lane.b32.xlu0 %v364, 127
        %v368 = vpop.permute.xlu0 %367
        %vm369 = vcmask 1039360
        %v370 = vsel %vm369, %v366, %v368
        %v372 = vsel %vm263, %v359, 0
        %v375 = vsel %vm267, %v370, 0
        %377 = vmatprep.subr.bf16.mxu0 0
        %378 = vmatpush1.bf16.msra.mxu0 %v375
        %379 = vmatprep.subr.bf16.mxu0 0
        %380 = vmatpush1.bf16.msra.mxu0 0
        %381 = vmatprep.subr.bf16.mxu0 0
        %382 = vmatpush1.bf16.msra.mxu0 0
        %383 = vmatprep.subr.bf16.mxu0 0
        %384 = vmatpush1.bf16.msra.mxu0 0
        %385 = vmatprep.subr.bf16.mxu0 0
        %386 = vmatpush1.bf16.msra.mxu0 0
        %387 = vmatprep.subr.bf16.mxu0 0
        %388 = vmatpush1.bf16.msra.mxu0 0
        %389 = vmatprep.subr.bf16.mxu0 0
        %390 = vmatpush1.bf16.msra.mxu0 0
        %391 = vmatprep.subr.bf16.mxu0 0
        %392 = vmatpush1.bf16.msra.mxu0 0
        %393 = vmatprep.subr.bf16.mxu0 0
        %394 = vmatpush1.bf16.msra.mxu0 0
        %395 = vmatprep.subr.bf16.mxu0 0
        %396 = vmatpush1.bf16.msra.mxu0 0
        %397 = vmatprep.subr.bf16.mxu0 0
        %398 = vmatpush1.bf16.msra.mxu0 0
        %399 = vmatprep.subr.bf16.mxu0 0
        %400 = vmatpush1.bf16.msra.mxu0 0
        %401 = vmatprep.subr.bf16.mxu0 0
        %402 = vmatpush1.bf16.msra.mxu0 0
        %403 = vmatprep.subr.bf16.mxu0 0
        %404 = vmatpush1.bf16.msra.mxu0 0
        %405 = vmatprep.subr.bf16.mxu0 0
        %406 = vmatpush1.bf16.msra.mxu0 0
        %407 = vmatprep.subr.bf16.mxu0 0
        %408 = vmatpush1.bf16.msra.mxu0 0
        %409 = vmatprep.mubr.bf16.mxu0 0
        %410 = vmatmul.mubr.bf16.gmra.mrb[0].mxu0 %v372
        %v411 = vpop.f32.mrb[0].mxu0
        %v412 = vadd.f32 0.0, %v411
        %v413 = vpop.f32.mrb[0].mxu0
        %v414 = vpop.f32.mrb[0].mxu0
        %v415 = vpop.f32.mrb[0].mxu0
        %416 = vdwg.mxu0
        %v417 = vadd.f32 %v352, %v412
        %v418 = vld [vmem:[%s256] sm:$0xff]
        %420 = vset.pattern.permute.xlu0 0
        %421 = vperm.xlu0 %420, %v418
        %v422 = vpop.permute.xlu0 %421
        %v424 = vadd.f32 %v417, %v422
        %425 = vst [vmem:[%s247] sm:$0xff] %v424
        %s426 = sand.u32 %s133, 1
        %s427 = scalar_lea.sflag [#allocation4], %s426
        %s428 = sand.u32 %s133, 1
        %s429 = smul.addr %s428, 8
        %s430 = scalar_lea.vmem [#allocation5], %s429
        // Predicated region
        $region37: #{tpu_custom_call.1} parent=31 // pred_check
          %p431 = pneg %p143
        $region38: #{tpu_custom_call.1} parent=31 // pred_check_branch
          %433 = sbr.rel (%p431) target = $region40
        $region39: #{tpu_custom_call.1} parent=31 // pred_region
          %s435 = ssub.s32 128, 128
          %436 = vsyncadd %s427, %s435
          %s437 = sadd.s32 %s27, %s26
          %s438 = sadd.s32 %s437, %s25
          %s439 = smul.addr %s438, 128
          %s440 = scalar_lea.hbm %s3, %s439
          %s442 = sshll.u32 %s430, 4
          %s443 = int_to_ptr.vmem [resolvable:$true] %s442
          %445 = dma.vmem_to_hbm [thread:$0]  %s443, 128, %s440, %s427
        $region40: #{tpu_custom_call.1} parent=31 // pred_fallthru
          _
      $region32: #{tpu_custom_call.1} parent=5 // pred_fallthru
        _
      %p446 = scmp.le.s32.totalorder 2, %s15
      // Predicated region
      $region41: #{tpu_custom_call.1} parent=5 // pred_check
        %p447 = pneg %p446
      $region42: #{tpu_custom_call.1} parent=5 // pred_check_branch
        %449 = sbr.rel (%p447) target = $region44
      $region43: #{tpu_custom_call.1} parent=5 // pred_region
        %s450 = ssub.s32 %s15, 2
        // Predicated region
        $region45: #{tpu_custom_call.1} parent=43 // pred_check
          %p451 = pneg %p149
        $region46: #{tpu_custom_call.1} parent=43 // pred_check_branch
          %453 = sbr.rel (%p451) target = $region48
        $region47: #{tpu_custom_call.1} parent=43 // pred_region
          %s454 = sand.u32 %s134, 1
          %s455 = scalar_lea.sflag [#allocation4], %s454
          %s456 = sand.u32 %s134, 1
          %s457 = smul.addr %s456, 8
          %s458 = scalar_lea.vmem [#allocation5], %s457
          %459 = dma.done %s455, 128
        $region48: #{tpu_custom_call.1} parent=43 // pred_fallthru
          _
      $region44: #{tpu_custom_call.1} parent=5 // pred_fallthru
        _
    $region6: #{tpu_custom_call.1} parent=1 // loop_footer
      %s19 = sadd.s32 1, %s15
    $region7: #{tpu_custom_call.1} parent=1 // loop_footer_branch
      %14 = sbr.rel target = $region3
    $region8: #{tpu_custom_call.1} parent=1 // loop_exit
      _
    %460 = vsyncpa [#allocation3], 1
    %s461 = scalar_lea.sflag [#allocation3], 1
    %462 = vsyncpa %s461, 1
    %463 = vsyncpa [#allocation4], 1
    %s464 = scalar_lea.sflag [#allocation4], 1
    %465 = vsyncpa %s464, 1

</llo_original>
